<compile_context>
chip_gen: v7x
topology: tpu7x:2x2x1
jax: 0.10.0
libtpu: 0.0.40
codegen_flags: <defaults>
</compile_context>

<pallas_src>
import jax
import jax.numpy as jnp
from jax.experimental import pallas as pl
from jax.experimental.pallas import tpu as pltpu


def _round_up(n: int, m: int) -> int:
    return ((n + m - 1) // m) * m


def _reference(x1, x2, w1, b1, w2, b2):
    x = x1 * x2
    h = jnp.maximum(x @ w1 + b1.reshape(1, -1), 0.0)
    return h @ w2 + b2.reshape(1, -1)


def hadamard_mlp_kernel(x1_ref, x2_ref, w1_ref, b1_ref, w2_ref, b2_ref, o_ref):
    # Hadamard merge on the VPU.
    x = x1_ref[...] * x2_ref[...]                                     # (TB, D)
    # Layer 1: MXU matmul with f32 accumulation; bias + ReLU on the VPU.
    h = jnp.dot(x, w1_ref[...], preferred_element_type=jnp.float32)   # (TB, H)
    h = jnp.maximum(h + b1_ref[...], 0.0)
    # Layer 2 (H -> 1), computed directly as a lane-dense row:
    #   (1, H) . (TB, H)^T -> (1, TB); batch ends up on the lane axis so the
    # store is a full-width unmasked vst and no sublane->lane relayout is needed.
    out_row = jax.lax.dot_general(
        w2_ref[...], h,
        dimension_numbers=(((1,), (1,)), ((), ())),
        preferred_element_type=jnp.float32,
    )                                                                  # (1, TB)
    o_ref[...] = (out_row + b2_ref[0, 0]).astype(o_ref.dtype)


def hadamard_merge_layer(x1, x2, w1, b1, w2, b2, *,
                         block_b: int = 4096,
                         min_pallas_batch: int = 1024):
    """out = relu((x1 * x2) @ w1 + b1) @ w2 + b2 (torch-Linear weights pre-transposed)."""
    B, D = x1.shape
    H = w1.shape[1]
    O = w2.shape[-1]

    # Fallbacks: the Pallas path is specialized to output_dim == 1 (module default),
    # and for tiny batches plain XLA fusion is faster than any kernel launch.
    if O != 1 or B < min_pallas_batch:
        return _reference(x1, x2, w1, b1, w2, b2)

    # Batch tile: multiple of 128 (lane-dense output), capped by block_b and by a
    # VMEM budget of ~8 MiB for the double-buffered x1/x2 streams.
    TB = min(_round_up(block_b, 128), _round_up(B, 128))
    vmem_rows_cap = max(128, (((8 * 1024 * 1024) // (2 * 2 * 4 * D)) // 128) * 128)
    TB = min(TB, vmem_rows_cap)

    num_blocks = pl.cdiv(B, TB)
    B_pad = num_blocks * TB  # output padded to full tiles; extra lanes sliced off

    b1_row = jnp.reshape(b1, (1, H)).astype(jnp.float32)
    w2_row = jnp.reshape(w2, (1, H)).astype(jnp.float32)   # lane-dense (1, H)
    b2_s = jnp.reshape(b2, (1, 1)).astype(jnp.float32)     # SMEM scalar

    flops = 2 * B * D * H + 2 * B * H + B * D
    bytes_accessed = 4 * (2 * B * D + D * H + 2 * H + 1 + B)

    out_row = pl.pallas_call(
        hadamard_mlp_kernel,
        out_shape=jax.ShapeDtypeStruct((1, B_pad), jnp.float32),
        grid=(num_blocks,),
        in_specs=[
            pl.BlockSpec((TB, D), lambda i: (i, 0)),     # x1 tile (streamed)
            pl.BlockSpec((TB, D), lambda i: (i, 0)),     # x2 tile (streamed)
            pl.BlockSpec((D, H), lambda i: (0, 0)),      # w1 (resident)
            pl.BlockSpec((1, H), lambda i: (0, 0)),      # b1 (resident)
            pl.BlockSpec((1, H), lambda i: (0, 0)),      # w2 row (resident)
            pl.BlockSpec(memory_space=pltpu.MemorySpace.SMEM),  # b2 scalar
        ],
        out_specs=pl.BlockSpec((1, TB), lambda i: (0, i)),  # lane-dense output row
        compiler_params=pltpu.CompilerParams(
            dimension_semantics=("parallel",),
            vmem_limit_bytes=32 * 1024 * 1024,
        ),
        cost_estimate=pl.CostEstimate(
            flops=flops, transcendentals=0, bytes_accessed=bytes_accessed
        ),
    )(x1, x2, w1, b1_row, w2_row, b2_s)

    # Back to the module's (B, 1) layout; drop lanes from the ragged last tile.
    return out_row[0, :B].reshape(B, 1)


if __name__ == "__main__":
    # Small shapes consistent with the module's forward:
    #   batch=8, input_dim=32, hidden_dim=32, output_dim=1
    B, D, Hdim, O = 8, 32, 32, 1

    key = jax.random.PRNGKey(0)
    k_x1, k_x2, k_w1, k_b1, k_w2, k_b2, k_big = jax.random.split(key, 7)

    x1 = jax.random.normal(k_x1, (B, D), dtype=jnp.float32)
    x2 = jax.random.normal(k_x2, (B, D), dtype=jnp.float32)

    # Deterministic synthetic parameter init (Kaiming-uniform-ish), torch-Linear
    # semantics with weights stored pre-transposed as [in, out].
    w1 = jax.random.uniform(k_w1, (D, Hdim), minval=-1.0, maxval=1.0) / jnp.sqrt(D)
    b1 = jax.random.uniform(k_b1, (Hdim,), minval=-1.0, maxval=1.0) / jnp.sqrt(D)
    w2 = jax.random.uniform(k_w2, (Hdim, O), minval=-1.0, maxval=1.0) / jnp.sqrt(Hdim)
    b2 = jax.random.uniform(k_b2, (O,), minval=-1.0, maxval=1.0) / jnp.sqrt(Hdim)

    # 1) Small batch forced through the Pallas path (single ragged tile).
    out = hadamard_merge_layer(x1, x2, w1, b1, w2, b2, min_pallas_batch=0)
    out = jax.block_until_ready(out)
    ref = _reference(x1, x2, w1, b1, w2, b2)
    assert out.shape == (B, O), out.shape
    assert jnp.allclose(out, ref, atol=1e-4, rtol=1e-4), "small-batch mismatch"

    # 2) Multi-tile batch with a ragged last block (no wrapper-side padding pass).
    B2 = 300
    kx1, kx2 = jax.random.split(k_big)
    x1b = jax.random.normal(kx1, (B2, D), dtype=jnp.float32)
    x2b = jax.random.normal(kx2, (B2, D), dtype=jnp.float32)
    out2 = hadamard_merge_layer(x1b, x2b, w1, b1, w2, b2,
                                block_b=128, min_pallas_batch=0)
    out2 = jax.block_until_ready(out2)
    ref2 = _reference(x1b, x2b, w1, b1, w2, b2)
    assert out2.shape == (B2, O), out2.shape
    assert jnp.allclose(out2, ref2, atol=1e-4, rtol=1e-4), "ragged-batch mismatch"

    print("KERNEL_OK")
</pallas_src>

<mosaic_0001>
module attributes {stable_mosaic.version = 11 : i64} {
  func.func @hadamard_mlp_kernel(%arg0: i32, %arg1: memref<128x32xf32, #tpu.memory_space<vmem>>, %arg2: memref<128x32xf32, #tpu.memory_space<vmem>>, %arg3: memref<32x32xf32, #tpu.memory_space<vmem>>, %arg4: memref<1x32xf32, #tpu.memory_space<vmem>>, %arg5: memref<1x32xf32, #tpu.memory_space<vmem>>, %arg6: memref<1x1xf32, #tpu.memory_space<smem>>, %arg7: memref<1x128xf32, #tpu.memory_space<vmem>>) attributes {dimension_semantics = [#tpu.dimension_semantics<parallel>], iteration_bounds = array<i64: 1>, scalar_prefetch = 0 : i64, scratch_operands = 0 : i64, tpu.core_type = #tpu.core_type<tc>, window_params = [{transform_indices = @transform_0, window_bounds = array<i64: 128, 32>}, {transform_indices = @transform_1, window_bounds = array<i64: 128, 32>}, {pipeline_mode = #tpu.pipeline_mode<synchronous>, transform_indices = @transform_2, window_bounds = array<i64: 32, 32>}, {pipeline_mode = #tpu.pipeline_mode<synchronous>, transform_indices = @transform_3, window_bounds = array<i64: 1, 32>}, {pipeline_mode = #tpu.pipeline_mode<synchronous>, transform_indices = @transform_4, window_bounds = array<i64: 1, 32>}, {transform_indices = @transform_5, window_bounds = array<i64: 1, 1>}, {transform_indices = @transform_6, window_bounds = array<i64: 1, 128>}]} {
    %c0 = arith.constant 0 : index
    %c0_0 = arith.constant 0 : index
    %0 = vector.load %arg1[%c0, %c0_0] : memref<128x32xf32, #tpu.memory_space<vmem>>, vector<128x32xf32>
    %c0_1 = arith.constant 0 : index
    %c0_2 = arith.constant 0 : index
    %1 = vector.load %arg2[%c0_1, %c0_2] : memref<128x32xf32, #tpu.memory_space<vmem>>, vector<128x32xf32>
    %2 = arith.mulf %0, %1 : vector<128x32xf32>
    %c0_3 = arith.constant 0 : index
    %c0_4 = arith.constant 0 : index
    %3 = vector.load %arg3[%c0_3, %c0_4] : memref<32x32xf32, #tpu.memory_space<vmem>>, vector<32x32xf32>
    %cst = arith.constant dense<0.000000e+00> : vector<128x32xf32>
    %4 = tpu.matmul %2, %3, %cst {dimension_numbers = #tpu.dot_dimension_numbers<[1], [0], [0], [1], [0, 0, 1, 1], [], []>} : vector<128x32xf32>, vector<32x32xf32>, vector<128x32xf32> -> vector<128x32xf32>
    %c0_5 = arith.constant 0 : index
    %c0_6 = arith.constant 0 : index
    %5 = vector.load %arg4[%c0_5, %c0_6] : memref<1x32xf32, #tpu.memory_space<vmem>>, vector<1x32xf32>
    %6 = vector.broadcast %5 : vector<1x32xf32> to vector<128x32xf32>
    %7 = arith.addf %4, %6 : vector<128x32xf32>
    %cst_7 = arith.constant 0.000000e+00 : f32
    %8 = vector.broadcast %cst_7 : f32 to vector<128x32xf32>
    %9 = arith.maximumf %7, %8 : vector<128x32xf32>
    %c0_8 = arith.constant 0 : index
    %c0_9 = arith.constant 0 : index
    %10 = vector.load %arg5[%c0_8, %c0_9] : memref<1x32xf32, #tpu.memory_space<vmem>>, vector<1x32xf32>
    %cst_10 = arith.constant dense<0.000000e+00> : vector<1x128xf32>
    %11 = tpu.matmul %10, %9, %cst_10 {dimension_numbers = #tpu.dot_dimension_numbers<[1], [1], [0], [0], [0, 0, 1, 0], [], []>} : vector<1x32xf32>, vector<128x32xf32>, vector<1x128xf32> -> vector<1x128xf32>
    %c0_11 = arith.constant 0 : index
    %c0_12 = arith.constant 0 : index
    %12 = memref.load %arg6[%c0_11, %c0_12] : memref<1x1xf32, #tpu.memory_space<smem>>
    %13 = vector.broadcast %12 : f32 to vector<1x128xf32>
    %14 = arith.addf %11, %13 : vector<1x128xf32>
    %c0_13 = arith.constant 0 : index
    %c0_14 = arith.constant 0 : index
    %15 = vector.load %arg7[%c0_13, %c0_14] : memref<1x128xf32, #tpu.memory_space<vmem>>, vector<1x128xf32>
    tpu.vector_store %arg7[%c0_13, %c0_14], %14 {strides = array<i32>} : memref<1x128xf32, #tpu.memory_space<vmem>>, vector<1x128xf32>,
    return
  }
  func.func @transform_0(%arg0: i32) -> (i32, i32) {
    %c0_i32 = arith.constant 0 : i32
    %c0_i32_0 = arith.constant 0 : i32
    return %arg0, %c0_i32 : i32, i32
  }
  func.func @transform_1(%arg0: i32) -> (i32, i32) {
    %c0_i32 = arith.constant 0 : i32
    %c0_i32_0 = arith.constant 0 : i32
    return %arg0, %c0_i32 : i32, i32
  }
  func.func @transform_2(%arg0: i32) -> (i32, i32) {
    %c0_i32 = arith.constant 0 : i32
    %c0_i32_0 = arith.constant 0 : i32
    %c0_i32_1 = arith.constant 0 : i32
    return %c0_i32, %c0_i32_0 : i32, i32
  }
  func.func @transform_3(%arg0: i32) -> (i32, i32) {
    %c0_i32 = arith.constant 0 : i32
    %c0_i32_0 = arith.constant 0 : i32
    %c0_i32_1 = arith.constant 0 : i32
    return %c0_i32, %c0_i32_0 : i32, i32
  }
  func.func @transform_4(%arg0: i32) -> (i32, i32) {
    %c0_i32 = arith.constant 0 : i32
    %c0_i32_0 = arith.constant 0 : i32
    %c0_i32_1 = arith.constant 0 : i32
    return %c0_i32, %c0_i32_0 : i32, i32
  }
  func.func @transform_5(%arg0: i32) -> (i32, i32) {
    %c0_i32 = arith.constant 0 : i32
    %c0_i32_0 = arith.constant 0 : i32
    %c0_i32_1 = arith.constant 0 : i32
    return %c0_i32, %c0_i32_0 : i32, i32
  }
  func.func @transform_6(%arg0: i32) -> (i32, i32) {
    %c0_i32 = arith.constant 0 : i32
    %c0_i32_0 = arith.constant 0 : i32
    return %c0_i32, %arg0 : i32, i32
  }
}

</mosaic_0001>

<llo_original>
// kernel: tpu_custom_call.1
$region0: #{tpu_custom_call.1}
  #allocation0 [shape = 'u32[]', space=smem, size = 0x4, offset = 0x4, fixed_abs, tag = 'smem constant byte address 0x4 - core index']
  #allocation1 [shape = 'u32[144,128]{1,0:T(1,128)}', space=vmem, size = 0x12000, scoped, tag = 'internal scratch']
  #allocation2 [shape = 'f32[1,1]{1,0:T(1,128)S(6)}', space=smem, size = 0x200, scoped, tag = 'scoped memory for tpu_custom_call.1']
  %s0 = inlined_call_operand.hbm [shape: f32[8,32], index: 0, kind: input, shape index: {}]
  %s1 = inlined_call_operand.hbm [shape: f32[8,32], index: 1, kind: input, shape index: {}]
  %s2 = inlined_call_operand.hbm [shape: f32[32,32], index: 2, kind: input, shape index: {}]
  %s3 = inlined_call_operand.vmem [shape: f32[1,32], index: 3, kind: input, shape index: {}]
  %s4 = inlined_call_operand.vmem [shape: f32[1,32], index: 4, kind: input, shape index: {}]
  %s5 = inlined_call_operand.<no memory space> [shape: f32[1,1], index: 5, kind: input, shape index: {}]
  %s6 = inlined_call_operand.hbm [shape: f32[1,128], index: 6, kind: output, shape index: {}]
  %s7 = sld [smem:[#allocation0]]
  $region46: #{tpu_custom_call.1} parent=0
    _
  %s9 = ssub.s32 1, %s7
  %s10 = scalar_select 0, %s9, %s7
  %11 = sst [smem:[#allocation2]] %s5
  $region1: #{tpu_custom_call.1} parent=0
    #allocation3 [shape = 'u8[65536]{0}', space=vmem, size = 0x10000, scoped, tag = 'input window, operand 0, single buffered']
    #allocation4 [shape = 's32[1]{0}', space=sflag, size = 0x4, scoped, tag = 'scoped memory for tpu_custom_call.1']
    #allocation5 [shape = 's32[1]{0}', space=sflag, size = 0x4, scoped, tag = 'scoped memory for tpu_custom_call.1']
    #allocation6 [shape = 'u8[65536]{0}', space=vmem, size = 0x10000, scoped, tag = 'input window, operand 1, single buffered']
    #allocation7 [shape = 's32[1]{0}', space=sflag, size = 0x4, scoped, tag = 'scoped memory for tpu_custom_call.1']
    #allocation8 [shape = 'u8[16384]{0}', space=vmem, size = 0x4000, scoped, tag = 'input window, operand 2, single buffered']
    #allocation9 [shape = 'u8[512]{0}', space=vmem, size = 0x400, scoped, tag = 'output window, operand 0, single buffered']
    %12 = vsyncpa [#allocation4], 0
    %13 = vsyncpa [#allocation7], 0
    %14 = vsyncpa [#allocation5], 0
    // Predicated region
    $region2: #{tpu_custom_call.1} parent=1 // pred_check
      _
    $region3: #{tpu_custom_call.1} parent=1 // pred_check_branch
      %16 = sbr.rel (0) target = $region5
    $region4: #{tpu_custom_call.1} parent=1 // pred_region
      %s18 = ssub.s32 2048, 128
      %19 = vsyncadd [#allocation4], %s18
      %s20 = sshll.u32 [#allocation3], 4
      %s21 = int_to_ptr.vmem [resolvable:$true] %s20
      %26 = dma.hbm_to_vmem [thread:$0]  %s0, 128, %s21, [#allocation4], 128, 128, 8
    $region5: #{tpu_custom_call.1} parent=1 // pred_fallthru
      _
    // Predicated region
    $region6: #{tpu_custom_call.1} parent=1 // pred_check
      _
    $region7: #{tpu_custom_call.1} parent=1 // pred_check_branch
      %28 = sbr.rel (0) target = $region9
    $region8: #{tpu_custom_call.1} parent=1 // pred_region
      %s30 = ssub.s32 2048, 128
      %31 = vsyncadd [#allocation7], %s30
      %s32 = sshll.u32 [#allocation6], 4
      %s33 = int_to_ptr.vmem [resolvable:$true] %s32
      %38 = dma.hbm_to_vmem [thread:$0]  %s1, 128, %s33, [#allocation7], 128, 128, 8
    $region9: #{tpu_custom_call.1} parent=1 // pred_fallthru
      _
    // Predicated region
    $region10: #{tpu_custom_call.1} parent=1 // pred_check
      _
    $region11: #{tpu_custom_call.1} parent=1 // pred_check_branch
      %40 = sbr.rel (0) target = $region13
    $region12: #{tpu_custom_call.1} parent=1 // pred_region
      %s42 = ssub.s32 512, 512
      %43 = vsyncadd [#allocation7], %s42
      %s44 = sshll.u32 [#allocation8], 4
      %s45 = int_to_ptr.vmem [resolvable:$true] %s44
      %50 = dma.hbm_to_vmem [thread:$0]  %s2, 512, %s45, [#allocation7], 128, 128, 8
    $region13: #{tpu_custom_call.1} parent=1 // pred_fallthru
      _
    // Predicated region
    $region14: #{tpu_custom_call.1} parent=1 // pred_check
      _
    $region15: #{tpu_custom_call.1} parent=1 // pred_check_branch
      %52 = sbr.rel (0) target = $region17
    $region16: #{tpu_custom_call.1} parent=1 // pred_region
      _
    $region17: #{tpu_custom_call.1} parent=1 // pred_fallthru
      _
    // Predicated region
    $region18: #{tpu_custom_call.1} parent=1 // pred_check
      _
    $region19: #{tpu_custom_call.1} parent=1 // pred_check_branch
      %54 = sbr.rel (0) target = $region21
    $region20: #{tpu_custom_call.1} parent=1 // pred_region
      _
    $region21: #{tpu_custom_call.1} parent=1 // pred_fallthru
      _
    // Predicated region
    $region22: #{tpu_custom_call.1} parent=1 // pred_check
      _
    $region23: #{tpu_custom_call.1} parent=1 // pred_check_branch
      %56 = sbr.rel (0) target = $region25
    $region24: #{tpu_custom_call.1} parent=1 // pred_region
      _
    $region25: #{tpu_custom_call.1} parent=1 // pred_fallthru
      _
    // Predicated region
    $region26: #{tpu_custom_call.1} parent=1 // pred_check
      _
    $region27: #{tpu_custom_call.1} parent=1 // pred_check_branch
      %58 = sbr.rel (0) target = $region29
    $region28: #{tpu_custom_call.1} parent=1 // pred_region
      %59 = dma.done [#allocation4], 2048
    $region29: #{tpu_custom_call.1} parent=1 // pred_fallthru
      _
    // Predicated region
    $region30: #{tpu_custom_call.1} parent=1 // pred_check
      _
    $region31: #{tpu_custom_call.1} parent=1 // pred_check_branch
      %61 = sbr.rel (0) target = $region33
    $region32: #{tpu_custom_call.1} parent=1 // pred_region
      %62 = dma.done [#allocation7], 2048
    $region33: #{tpu_custom_call.1} parent=1 // pred_fallthru
      _
    // Predicated region
    $region34: #{tpu_custom_call.1} parent=1 // pred_check
      _
    $region35: #{tpu_custom_call.1} parent=1 // pred_check_branch
      %64 = sbr.rel (0) target = $region37
    $region36: #{tpu_custom_call.1} parent=1 // pred_region
      %65 = dma.done [#allocation7], 512
    $region37: #{tpu_custom_call.1} parent=1 // pred_fallthru
      _
    %v66 = vld [vmem:[#allocation3] sm:$0xff]
    %v67 = vld [vmem:[#allocation3 + $0x8] sm:$0xff]
    %v68 = vld [vmem:[#allocation3 + $0x10] sm:$0xff]
    %v69 = vld [vmem:[#allocation3 + $0x18] sm:$0xff]
    %v70 = vld [vmem:[#allocation3 + $0x20] sm:$0xff]
    %v71 = vld [vmem:[#allocation3 + $0x28] sm:$0xff]
    %v72 = vld [vmem:[#allocation3 + $0x30] sm:$0xff]
    %v73 = vld [vmem:[#allocation3 + $0x38] sm:$0xff]
    %v74 = vld [vmem:[#allocation3 + $0x40] sm:$0xff]
    %v75 = vld [vmem:[#allocation3 + $0x48] sm:$0xff]
    %v76 = vld [vmem:[#allocation3 + $0x50] sm:$0xff]
    %v77 = vld [vmem:[#allocation3 + $0x58] sm:$0xff]
    %v78 = vld [vmem:[#allocation3 + $0x60] sm:$0xff]
    %v79 = vld [vmem:[#allocation3 + $0x68] sm:$0xff]
    %v80 = vld [vmem:[#allocation3 + $0x70] sm:$0xff]
    %v81 = vld [vmem:[#allocation3 + $0x78] sm:$0xff]
    %v82 = vld [vmem:[#allocation6] sm:$0xff]
    %v83 = vld [vmem:[#allocation6 + $0x8] sm:$0xff]
    %v84 = vld [vmem:[#allocation6 + $0x10] sm:$0xff]
    %v85 = vld [vmem:[#allocation6 + $0x18] sm:$0xff]
    %v86 = vld [vmem:[#allocation6 + $0x20] sm:$0xff]
    %v87 = vld [vmem:[#allocation6 + $0x28] sm:$0xff]
    %v88 = vld [vmem:[#allocation6 + $0x30] sm:$0xff]
    %v89 = vld [vmem:[#allocation6 + $0x38] sm:$0xff]
    %v90 = vld [vmem:[#allocation6 + $0x40] sm:$0xff]
    %v91 = vld [vmem:[#allocation6 + $0x48] sm:$0xff]
    %v92 = vld [vmem:[#allocation6 + $0x50] sm:$0xff]
    %v93 = vld [vmem:[#allocation6 + $0x58] sm:$0xff]
    %v94 = vld [vmem:[#allocation6 + $0x60] sm:$0xff]
    %v95 = vld [vmem:[#allocation6 + $0x68] sm:$0xff]
    %v96 = vld [vmem:[#allocation6 + $0x70] sm:$0xff]
    %v97 = vld [vmem:[#allocation6 + $0x78] sm:$0xff]
    %v98 = vmul.f32 %v66, %v82
    %v99 = vmul.f32 %v67, %v83
    %v100 = vmul.f32 %v68, %v84
    %v101 = vmul.f32 %v69, %v85
    %v102 = vmul.f32 %v70, %v86
    %v103 = vmul.f32 %v71, %v87
    %v104 = vmul.f32 %v72, %v88
    %v105 = vmul.f32 %v73, %v89
    %v106 = vmul.f32 %v74, %v90
    %v107 = vmul.f32 %v75, %v91
    %v108 = vmul.f32 %v76, %v92
    %v109 = vmul.f32 %v77, %v93
    %v110 = vmul.f32 %v78, %v94
    %v111 = vmul.f32 %v79, %v95
    %v112 = vmul.f32 %v80, %v96
    %v113 = vmul.f32 %v81, %v97
    %v114 = vld [vmem:[#allocation8] sm:$0xff]
    %v115 = vld [vmem:[#allocation8 + $0x8] sm:$0xff]
    %v116 = vld [vmem:[#allocation8 + $0x10] sm:$0xff]
    %v117 = vld [vmem:[#allocation8 + $0x18] sm:$0xff]
    %v118 = vld [vmem:[%s3] sm:$0x1]
    %v120 = vlaneseq
    %v121 = vshrl.u32 %v120, 7
    %v122 = vsub.s32 0, %v121
    %v123 = vrot.slane %v118, %v122
    %vm125 = vcmask 261120
    %v127 = vsel %vm125, %v98, 0
    %v130 = vsel %vm125, %v99, 0
    %v133 = vsel %vm125, %v100, 0
    %v136 = vsel %vm125, %v101, 0
    %v139 = vsel %vm125, %v102, 0
    %v142 = vsel %vm125, %v103, 0
    %v145 = vsel %vm125, %v104, 0
    %v148 = vsel %vm125, %v105, 0
    %v151 = vsel %vm125, %v106, 0
    %v154 = vsel %vm125, %v107, 0
    %v157 = vsel %vm125, %v108, 0
    %v160 = vsel %vm125, %v109, 0
    %v163 = vsel %vm125, %v110, 0
    %v166 = vsel %vm125, %v111, 0
    %v169 = vsel %vm125, %v112, 0
    %v172 = vsel %vm125, %v113, 0
    %174 = vmatprep.subr.mxu0 0.0
    %175 = vmatpush1.msra.mxu0 %v114
    %176 = vmatprep.subr.mxu0 0.0
    %177 = vmatpush1.msra.mxu0 %v115
    %178 = vmatprep.subr.mxu0 0.0
    %179 = vmatpush1.msra.mxu0 %v116
    %180 = vmatprep.subr.mxu0 0.0
    %181 = vmatpush1.msra.mxu0 %v117
    %182 = vmatprep.subr.mxu0 0.0
    %183 = vmatpush1.msra.mxu0 0.0
    %184 = vmatprep.subr.mxu0 0.0
    %185 = vmatpush1.msra.mxu0 0.0
    %186 = vmatprep.subr.mxu0 0.0
    %187 = vmatpush1.msra.mxu0 0.0
    %188 = vmatprep.subr.mxu0 0.0
    %189 = vmatpush1.msra.mxu0 0.0
    %190 = vmatprep.subr.mxu0 0.0
    %191 = vmatpush1.msra.mxu0 0.0
    %192 = vmatprep.subr.mxu0 0.0
    %193 = vmatpush1.msra.mxu0 0.0
    %194 = vmatprep.subr.mxu0 0.0
    %195 = vmatpush1.msra.mxu0 0.0
    %196 = vmatprep.subr.mxu0 0.0
    %197 = vmatpush1.msra.mxu0 0.0
    %198 = vmatprep.subr.mxu0 0.0
    %199 = vmatpush1.msra.mxu0 0.0
    %200 = vmatprep.subr.mxu0 0.0
    %201 = vmatpush1.msra.mxu0 0.0
    %202 = vmatprep.subr.mxu0 0.0
    %203 = vmatpush1.msra.mxu0 0.0
    %204 = vmatprep.subr.mxu0 0.0
    %205 = vmatpush1.msra.mxu0 0.0
    %206 = vmatprep.subr.mxu0 0.0
    %207 = vmatpush1.msra.mxu0 0.0
    %208 = vmatprep.subr.mxu0 0.0
    %209 = vmatpush1.msra.mxu0 0.0
    %210 = vmatprep.subr.mxu0 0.0
    %211 = vmatpush1.msra.mxu0 0.0
    %212 = vmatprep.subr.mxu0 0.0
    %213 = vmatpush1.msra.mxu0 0.0
    %214 = vmatprep.subr.mxu0 0.0
    %215 = vmatpush1.msra.mxu0 0.0
    %216 = vmatprep.subr.mxu0 0.0
    %217 = vmatpush1.msra.mxu0 0.0
    %218 = vmatprep.subr.mxu0 0.0
    %219 = vmatpush1.msra.mxu0 0.0
    %220 = vmatprep.subr.mxu0 0.0
    %221 = vmatpush1.msra.mxu0 0.0
    %222 = vmatprep.subr.mxu0 0.0
    %223 = vmatpush1.msra.mxu0 0.0
    %224 = vmatprep.subr.mxu0 0.0
    %225 = vmatpush1.msra.mxu0 0.0
    %226 = vmatprep.subr.mxu0 0.0
    %227 = vmatpush1.msra.mxu0 0.0
    %228 = vmatprep.subr.mxu0 0.0
    %229 = vmatpush1.msra.mxu0 0.0
    %230 = vmatprep.subr.mxu0 0.0
    %231 = vmatpush1.msra.mxu0 0.0
    %232 = vmatprep.subr.mxu0 0.0
    %233 = vmatpush1.msra.mxu0 0.0
    %234 = vmatprep.subr.mxu0 0.0
    %235 = vmatpush1.msra.mxu0 0.0
    %236 = vmatprep.subr.mxu0 0.0
    %237 = vmatpush1.msra.mxu0 0.0
    %238 = vmatprep.mubr.f32.mxu0 0.0
    %239 = vmatmul.mubr.f32.gmra.mrb[0].mxu0 %v127
    %v240 = vpop.f32.mrb[0].mxu0
    %v241 = vadd.f32 %v123, %v240
    %v242 = vpop.f32.mrb[0].mxu0
    %243 = vmatprep.mubr.f32.mxu0 0.0
    %244 = vmatmul.mubr.f32.gmra.mrb[0].mxu0 %v130
    %v245 = vpop.f32.mrb[0].mxu0
    %v246 = vadd.f32 %v123, %v245
    %v247 = vpop.f32.mrb[0].mxu0
    %248 = vmatprep.mubr.f32.mxu0 0.0
    %249 = vmatmul.mubr.f32.gmra.mrb[0].mxu0 %v133
    %v250 = vpop.f32.mrb[0].mxu0
    %v251 = vadd.f32 %v123, %v250
    %v252 = vpop.f32.mrb[0].mxu0
    %253 = vmatprep.mubr.f32.mxu0 0.0
    %254 = vmatmul.mubr.f32.gmra.mrb[0].mxu0 %v136
    %v255 = vpop.f32.mrb[0].mxu0
    %v256 = vadd.f32 %v123, %v255
    %v257 = vpop.f32.mrb[0].mxu0
    %258 = vmatprep.mubr.f32.mxu0 0.0
    %259 = vmatmul.mubr.f32.gmra.mrb[0].mxu0 %v139
    %v260 = vpop.f32.mrb[0].mxu0
    %v261 = vadd.f32 %v123, %v260
    %v262 = vpop.f32.mrb[0].mxu0
    %263 = vmatprep.mubr.f32.mxu0 0.0
    %264 = vmatmul.mubr.f32.gmra.mrb[0].mxu0 %v142
    %v265 = vpop.f32.mrb[0].mxu0
    %v266 = vadd.f32 %v123, %v265
    %v267 = vpop.f32.mrb[0].mxu0
    %268 = vmatprep.mubr.f32.mxu0 0.0
    %269 = vmatmul.mubr.f32.gmra.mrb[0].mxu0 %v145
    %v270 = vpop.f32.mrb[0].mxu0
    %v271 = vadd.f32 %v123, %v270
    %v272 = vpop.f32.mrb[0].mxu0
    %273 = vmatprep.mubr.f32.mxu0 0.0
    %274 = vmatmul.mubr.f32.gmra.mrb[0].mxu0 %v148
    %v275 = vpop.f32.mrb[0].mxu0
    %v276 = vadd.f32 %v123, %v275
    %v277 = vpop.f32.mrb[0].mxu0
    %278 = vmatprep.mubr.f32.mxu0 0.0
    %279 = vmatmul.mubr.f32.gmra.mrb[0].mxu0 %v151
    %v280 = vpop.f32.mrb[0].mxu0
    %v281 = vadd.f32 %v123, %v280
    %v282 = vpop.f32.mrb[0].mxu0
    %283 = vmatprep.mubr.f32.mxu0 0.0
    %284 = vmatmul.mubr.f32.gmra.mrb[0].mxu0 %v154
    %v285 = vpop.f32.mrb[0].mxu0
    %v286 = vadd.f32 %v123, %v285
    %v287 = vpop.f32.mrb[0].mxu0
    %288 = vmatprep.mubr.f32.mxu0 0.0
    %289 = vmatmul.mubr.f32.gmra.mrb[0].mxu0 %v157
    %v290 = vpop.f32.mrb[0].mxu0
    %v291 = vadd.f32 %v123, %v290
    %v292 = vpop.f32.mrb[0].mxu0
    %293 = vmatprep.mubr.f32.mxu0 0.0
    %294 = vmatmul.mubr.f32.gmra.mrb[0].mxu0 %v160
    %v295 = vpop.f32.mrb[0].mxu0
    %v296 = vadd.f32 %v123, %v295
    %v297 = vpop.f32.mrb[0].mxu0
    %298 = vmatprep.mubr.f32.mxu0 0.0
    %299 = vmatmul.mubr.f32.gmra.mrb[0].mxu0 %v163
    %v300 = vpop.f32.mrb[0].mxu0
    %v301 = vadd.f32 %v123, %v300
    %v302 = vpop.f32.mrb[0].mxu0
    %303 = vmatprep.mubr.f32.mxu0 0.0
    %304 = vmatmul.mubr.f32.gmra.mrb[0].mxu0 %v166
    %v305 = vpop.f32.mrb[0].mxu0
    %v306 = vadd.f32 %v123, %v305
    %v307 = vpop.f32.mrb[0].mxu0
    %308 = vmatprep.mubr.f32.mxu0 0.0
    %309 = vmatmul.mubr.f32.gmra.mrb[0].mxu0 %v169
    %v310 = vpop.f32.mrb[0].mxu0
    %v311 = vadd.f32 %v123, %v310
    %v312 = vpop.f32.mrb[0].mxu0
    %313 = vmatprep.mubr.f32.mxu0 0.0
    %314 = vmatmul.mubr.f32.gmra.mrb[0].mxu0 %v172
    %v315 = vpop.f32.mrb[0].mxu0
    %v316 = vadd.f32 %v123, %v315
    %v317 = vpop.f32.mrb[0].mxu0
    %318 = vdwg.mxu0
    %v319 = vmax.f32 %v241, 0.0
    %v320 = vmax.f32 %v246, 0.0
    %v321 = vmax.f32 %v251, 0.0
    %v322 = vmax.f32 %v256, 0.0
    %v323 = vmax.f32 %v261, 0.0
    %v324 = vmax.f32 %v266, 0.0
    %v325 = vmax.f32 %v271, 0.0
    %v326 = vmax.f32 %v276, 0.0
    %v327 = vmax.f32 %v281, 0.0
    %v328 = vmax.f32 %v286, 0.0
    %v329 = vmax.f32 %v291, 0.0
    %v330 = vmax.f32 %v296, 0.0
    %v331 = vmax.f32 %v301, 0.0
    %v332 = vmax.f32 %v306, 0.0
    %v333 = vmax.f32 %v311, 0.0
    %v334 = vmax.f32 %v316, 0.0
    %v335 = vld [vmem:[%s4] sm:$0x1]
    %s336 = sld [smem:[#allocation2]]
    %v337 = vstv %s336
    %v339 = vsel %vm125, %v335, 0
    %v342 = vsel %vm125, %v319, 0
    %v345 = vsel %vm125, %v320, 0
    %v348 = vsel %vm125, %v321, 0
    %v351 = vsel %vm125, %v322, 0
    %v354 = vsel %vm125, %v323, 0
    %v357 = vsel %vm125, %v324, 0
    %v360 = vsel %vm125, %v325, 0
    %v363 = vsel %vm125, %v326, 0
    %v366 = vsel %vm125, %v327, 0
    %v369 = vsel %vm125, %v328, 0
    %v372 = vsel %vm125, %v329, 0
    %v375 = vsel %vm125, %v330, 0
    %v378 = vsel %vm125, %v331, 0
    %v381 = vsel %vm125, %v332, 0
    %v384 = vsel %vm125, %v333, 0
    %v387 = vsel %vm125, %v334, 0
    %389 = vmatprep.subr.mxu0 0.0
    %390 = vmatpush1.xpose.msra.mxu0 %v342
    %391 = vmatprep.subr.mxu0 0.0
    %392 = vmatpush1.xpose.msra.mxu0 %v345
    %393 = vmatprep.subr.mxu0 0.0
    %394 = vmatpush1.xpose.msra.mxu0 %v348
    %395 = vmatprep.subr.mxu0 0.0
    %396 = vmatpush1.xpose.msra.mxu0 %v351
    %397 = vmatprep.subr.mxu0 0.0
    %398 = vmatpush1.xpose.msra.mxu0 %v354
    %399 = vmatprep.subr.mxu0 0.0
    %400 = vmatpush1.xpose.msra.mxu0 %v357
    %401 = vmatprep.subr.mxu0 0.0
    %402 = vmatpush1.xpose.msra.mxu0 %v360
    %403 = vmatprep.subr.mxu0 0.0
    %404 = vmatpush1.xpose.msra.mxu0 %v363
    %405 = vmatprep.subr.mxu0 0.0
    %406 = vmatpush1.xpose.msra.mxu0 %v366
    %407 = vmatprep.subr.mxu0 0.0
    %408 = vmatpush1.xpose.msra.mxu0 %v369
    %409 = vmatprep.subr.mxu0 0.0
    %410 = vmatpush1.xpose.msra.mxu0 %v372
    %411 = vmatprep.subr.mxu0 0.0
    %412 = vmatpush1.xpose.msra.mxu0 %v375
    %413 = vmatprep.subr.mxu0 0.0
    %414 = vmatpush1.xpose.msra.mxu0 %v378
    %415 = vmatprep.subr.mxu0 0.0
    %416 = vmatpush1.xpose.msra.mxu0 %v381
    %417 = vmatprep.subr.mxu0 0.0
    %418 = vmatpush1.xpose.msra.mxu0 %v384
    %419 = vmatprep.subr.mxu0 0.0
    %420 = vmatpush1.xpose.msra.mxu0 %v387
    %421 = vmatprep.subr.mxu0 0.0
    %422 = vmatpush1.xpose.msra.mxu0 0.0
    %423 = vmatprep.subr.mxu0 0.0
    %424 = vmatpush1.xpose.msra.mxu0 0.0
    %425 = vmatprep.subr.mxu0 0.0
    %426 = vmatpush1.xpose.msra.mxu0 0.0
    %427 = vmatprep.subr.mxu0 0.0
    %428 = vmatpush1.xpose.msra.mxu0 0.0
    %429 = vmatprep.subr.mxu0 0.0
    %430 = vmatpush1.xpose.msra.mxu0 0.0
    %431 = vmatprep.subr.mxu0 0.0
    %432 = vmatpush1.xpose.msra.mxu0 0.0
    %433 = vmatprep.subr.mxu0 0.0
    %434 = vmatpush1.xpose.msra.mxu0 0.0
    %435 = vmatprep.subr.mxu0 0.0
    %436 = vmatpush1.xpose.msra.mxu0 0.0
    %437 = vmatprep.subr.mxu0 0.0
    %438 = vmatpush1.xpose.msra.mxu0 0.0
    %439 = vmatprep.subr.mxu0 0.0
    %440 = vmatpush1.xpose.msra.mxu0 0.0
    %441 = vmatprep.subr.mxu0 0.0
    %442 = vmatpush1.xpose.msra.mxu0 0.0
    %443 = vmatprep.subr.mxu0 0.0
    %444 = vmatpush1.xpose.msra.mxu0 0.0
    %445 = vmatprep.subr.mxu0 0.0
    %446 = vmatpush1.xpose.msra.mxu0 0.0
    %447 = vmatprep.subr.mxu0 0.0
    %448 = vmatpush1.xpose.msra.mxu0 0.0
    %449 = vmatprep.subr.mxu0 0.0
    %450 = vmatpush1.xpose.msra.mxu0 0.0
    %451 = vmatprep.subr.mxu0 0.0
    %452 = vmatpush1.xpose.msra.mxu0 0.0
    %453 = vmatprep.mubr.f32.mxu0 0.0
    %454 = vmatmul.mubr.f32.gmra.mrb[0].mxu0 %v339
    %v455 = vpop.f32.mrb[0].mxu0
    %v456 = vadd.f32 %v337, %v455
    %v457 = vpop.f32.mrb[0].mxu0
    %458 = vdwg.mxu0
    %459 = vst [vmem:[#allocation9] sm:$0x1] %v456
    // Predicated region
    $region38: #{tpu_custom_call.1} parent=1 // pred_check
      _
    $region39: #{tpu_custom_call.1} parent=1 // pred_check_branch
      %461 = sbr.rel (0) target = $region41
    $region40: #{tpu_custom_call.1} parent=1 // pred_region
      %s463 = ssub.s32 16, 16
      %464 = vsyncadd [#allocation5], %s463
      %s466 = sshll.u32 [#allocation9], 4
      %s467 = int_to_ptr.vmem [resolvable:$true] %s466
      %469 = dma.vmem_to_hbm [thread:$0]  %s467, 16, %s6, [#allocation5]
    $region41: #{tpu_custom_call.1} parent=1 // pred_fallthru
      _
    // Predicated region
    $region42: #{tpu_custom_call.1} parent=1 // pred_check
      _
    $region43: #{tpu_custom_call.1} parent=1 // pred_check_branch
      %471 = sbr.rel (0) target = $region45
    $region44: #{tpu_custom_call.1} parent=1 // pred_region
      %472 = dma.done [#allocation5], 16
    $region45: #{tpu_custom_call.1} parent=1 // pred_fallthru
      _
    %473 = vsyncpa [#allocation4], 1
    %474 = vsyncpa [#allocation7], 1
    %475 = vsyncpa [#allocation5], 1

</llo_original>
